<compile_context>
chip_gen: v6e
topology: v6e:2x2x1
jax: 0.10.0
libtpu: 0.0.40
codegen_flags: <defaults>
</compile_context>

<pallas_src>
import jax
import jax.numpy as jnp
from jax.experimental import pallas as pl
from jax.experimental.pallas import tpu as pltpu

IN_SIZE = 240
H1, H2, H3, OUT = 128, 64, 32, 24


def mlp_kernel(x_ref,
               w1_ref, b1_ref,
               w2_ref, b2_ref,
               w3_ref, b3_ref,
               w4_ref, b4_ref,
               o_ref):
    """Fused 4-layer MLP forward on one (tb, IN_SIZE) batch tile.

    Matmul operands are cast to the weight dtype (bf16 by default) and
    accumulated in f32 on the MXU; bias + ReLU run in f32 on the VPU.

    NOTE on ragged last blocks: rows of x_ref beyond the true batch are
    undefined (whatever the padded DMA brought in). Their results may be
    garbage, which is benign because rows are independent and the masked
    output writeback discards them. Do NOT turn this into a reduction over
    rows without masking first.
    """
    cdt = w1_ref.dtype  # compute dtype for MXU operands (bf16 or f32)

    h = jnp.dot(x_ref[...].astype(cdt), w1_ref[...],
                preferred_element_type=jnp.float32)
    h = jnp.maximum(h + b1_ref[...], 0.0)

    h = jnp.dot(h.astype(cdt), w2_ref[...],
                preferred_element_type=jnp.float32)
    h = jnp.maximum(h + b2_ref[...], 0.0)

    h = jnp.dot(h.astype(cdt), w3_ref[...],
                preferred_element_type=jnp.float32)
    h = jnp.maximum(h + b3_ref[...], 0.0)

    y = jnp.dot(h.astype(cdt), w4_ref[...],
                preferred_element_type=jnp.float32)
    o_ref[...] = (y + b4_ref[...]).astype(o_ref.dtype)


def prepare_params(params, compute_dtype=jnp.bfloat16):
    """One-time parameter prep (hoisted out of the per-call wrapper).

    Weights are cast to the MXU compute dtype; biases stay f32 with shape
    (1, out) for the VPU broadcast-add.
    """
    prepped = {}
    for idx in range(1, 5):
        prepped[f"w{idx}"] = params[f"w{idx}"].astype(compute_dtype)
        prepped[f"b{idx}"] = params[f"b{idx}"].astype(jnp.float32).reshape(1, -1)
    return prepped


def _round_up(x, m):
    return (x + m - 1) // m * m


def two_hidden_layer_reg(x, prepped, *, tb=None):
    """Forward pass of TwoHiddenLayerReg.

    x:       (B, 240), float32 or bfloat16 (consumed as-is, cast in-kernel)
    prepped: output of prepare_params()
    returns  (B, 24) float32
    tb:      optional explicit batch tile (must be a multiple of 8 if < B)
    """
    B, in_size = x.shape
    assert in_size == IN_SIZE

    w1, b1 = prepped["w1"], prepped["b1"]
    w2, b2 = prepped["w2"], prepped["b2"]
    w3, b3 = prepped["w3"], prepped["b3"]
    w4, b4 = prepped["w4"], prepped["b4"]

    # Batch tile heuristic:
    #   * B <= 1024: single grid step (no pipeline prologue/epilogue).
    #   * Larger B: tiles of up to 2048 rows, with an EVEN number of grid
    #     steps >= 2 so the "parallel" axis shards evenly across v7x's two
    #     TensorCores (no effect on single-TC v5e/v6e).
    if tb is None:
        if B <= 1024:
            tb = B
        else:
            n_steps = pl.cdiv(B, 2048)
            if n_steps % 2:
                n_steps += 1
            tb = _round_up(pl.cdiv(B, n_steps), 8)
    tb = min(tb, B)
    grid = (pl.cdiv(B, tb),)

    def full_block(arr):
        shape = arr.shape
        return pl.BlockSpec(shape, lambda i: (0,) * len(shape))

    x_itemsize = jnp.dtype(x.dtype).itemsize
    weight_bytes = sum(int(a.size) * jnp.dtype(a.dtype).itemsize
                       for a in (w1, b1, w2, b2, w3, b3, w4, b4))
    cost = pl.CostEstimate(
        flops=2 * B * (IN_SIZE * H1 + H1 * H2 + H2 * H3 + H3 * OUT),
        transcendentals=0,
        bytes_accessed=B * IN_SIZE * x_itemsize + B * OUT * 4 + weight_bytes,
    )

    # VMEM footprint estimate: double-buffered x / out tiles + resident
    # (double-buffered) params + f32 hidden activations. Only override the
    # scoped-VMEM limit when we'd exceed v5e's 16 MiB default (minus headroom).
    vmem_est = (2 * tb * (IN_SIZE * x_itemsize + OUT * 4)
                + 2 * weight_bytes
                + tb * (H1 + H2 + H3) * 4)
    compiler_kwargs = dict(dimension_semantics=("parallel",))
    if vmem_est > 12 * 1024 * 1024:
        compiler_kwargs["vmem_limit_bytes"] = int(
            min(2 * vmem_est, 64 * 1024 * 1024))

    return pl.pallas_call(
        mlp_kernel,
        out_shape=jax.ShapeDtypeStruct((B, OUT), jnp.float32),
        grid_spec=pl.GridSpec(
            grid=grid,
            in_specs=[
                pl.BlockSpec((tb, IN_SIZE), lambda i: (i, 0)),
                full_block(w1), full_block(b1),
                full_block(w2), full_block(b2),
                full_block(w3), full_block(b3),
                full_block(w4), full_block(b4),
            ],
            out_specs=pl.BlockSpec((tb, OUT), lambda i: (i, 0)),
        ),
        compiler_params=pltpu.CompilerParams(**compiler_kwargs),
        cost_estimate=cost,
    )(x, w1, b1, w2, b2, w3, b3, w4, b4)


def init_params(key):
    """Deterministic init mirroring nn.Linear shapes (stored as (in, out))."""
    dims = [(IN_SIZE, H1), (H1, H2), (H2, H3), (H3, OUT)]
    params = {}
    for idx, (fan_in, fan_out) in enumerate(dims, start=1):
        key, kw, kb = jax.random.split(key, 3)
        bound = 1.0 / (fan_in ** 0.5)  # PyTorch nn.Linear default init range
        params[f"w{idx}"] = jax.random.uniform(
            kw, (fan_in, fan_out), jnp.float32, minval=-bound, maxval=bound)
        params[f"b{idx}"] = jax.random.uniform(
            kb, (1, fan_out), jnp.float32, minval=-bound, maxval=bound)
    return params


def reference_forward(x, params):
    """Pure f32 JAX reference (device-default matmul precision)."""
    h = jnp.maximum(x @ params["w1"] + params["b1"], 0.0)
    h = jnp.maximum(h @ params["w2"] + params["b2"], 0.0)
    h = jnp.maximum(h @ params["w3"] + params["b3"], 0.0)
    return h @ params["w4"] + params["b4"]


def reference_forward_matched(x, params, compute_dtype):
    """Reference mirroring the kernel's mixed-precision recipe."""
    def dot(a, w):
        return jnp.dot(a.astype(compute_dtype), w.astype(compute_dtype),
                       preferred_element_type=jnp.float32)
    h = jnp.maximum(dot(x, params["w1"]) + params["b1"], 0.0)
    h = jnp.maximum(dot(h, params["w2"]) + params["b2"], 0.0)
    h = jnp.maximum(dot(h, params["w3"]) + params["b3"], 0.0)
    return dot(h, params["w4"]) + params["b4"]


if __name__ == "__main__":
    key = jax.random.PRNGKey(0)
    key, kx = jax.random.split(key)
    B = 8
    x = jax.random.normal(kx, (B, IN_SIZE), jnp.float32)
    params = init_params(key)

    prepped_bf16 = prepare_params(params, jnp.bfloat16)   # production path
    prepped_f32 = prepare_params(params, jnp.float32)     # debug path only

    # 1) f32 debug path vs pure-JAX f32 reference (both at device-default
    #    matmul precision; not bit-exact f32 unless Precision.HIGHEST is used).
    out_f32 = jax.block_until_ready(two_hidden_layer_reg(x, prepped_f32))
    ref_f32 = reference_forward(x, params)
    assert out_f32.shape == (B, OUT)
    assert jnp.allclose(out_f32, ref_f32, atol=1e-5, rtol=1e-5)

    # 2) Default fast path (bf16 MXU operands, f32 accumulation), single step.
    out_bf16 = jax.block_until_ready(two_hidden_layer_reg(x, prepped_bf16))
    ref_bf16 = reference_forward_matched(x, params, jnp.bfloat16)
    assert out_bf16.shape == (B, OUT)
    assert jnp.allclose(out_bf16, ref_bf16, atol=1e-3, rtol=1e-3)
    assert jnp.allclose(out_bf16, ref_f32, atol=5e-2, rtol=5e-2)

    # 3) Multi-step tiled grid with a ragged remainder block (B=200, tb=64 ->
    #    4 grid steps, last block only 8 valid rows) to validate the tiling /
    #    masked-edge writeback at small shapes.
    B2 = 200
    x2 = jax.random.normal(kx, (B2, IN_SIZE), jnp.float32)
    out2 = jax.block_until_ready(two_hidden_layer_reg(x2, prepped_bf16, tb=64))
    ref2 = reference_forward_matched(x2, params, jnp.bfloat16)
    assert out2.shape == (B2, OUT)
    assert jnp.allclose(out2, ref2, atol=1e-3, rtol=1e-3)

    print("KERNEL_OK")
</pallas_src>

<mosaic_0001>
module attributes {stable_mosaic.version = 11 : i64} {
  func.func @mlp_kernel(%arg0: i32, %arg1: memref<8x240xf32, #tpu.memory_space<vmem>>, %arg2: memref<240x128xf32, #tpu.memory_space<vmem>>, %arg3: memref<1x128xf32, #tpu.memory_space<vmem>>, %arg4: memref<128x64xf32, #tpu.memory_space<vmem>>, %arg5: memref<1x64xf32, #tpu.memory_space<vmem>>, %arg6: memref<64x32xf32, #tpu.memory_space<vmem>>, %arg7: memref<1x32xf32, #tpu.memory_space<vmem>>, %arg8: memref<32x24xf32, #tpu.memory_space<vmem>>, %arg9: memref<1x24xf32, #tpu.memory_space<vmem>>, %arg10: memref<8x24xf32, #tpu.memory_space<vmem>>) attributes {dimension_semantics = [#tpu.dimension_semantics<parallel>], iteration_bounds = array<i64: 1>, scalar_prefetch = 0 : i64, scratch_operands = 0 : i64, tpu.core_type = #tpu.core_type<tc>, window_params = [{transform_indices = @transform_0, window_bounds = array<i64: 8, 240>}, {pipeline_mode = #tpu.pipeline_mode<synchronous>, transform_indices = @transform_1, window_bounds = array<i64: 240, 128>}, {pipeline_mode = #tpu.pipeline_mode<synchronous>, transform_indices = @transform_2, window_bounds = array<i64: 1, 128>}, {pipeline_mode = #tpu.pipeline_mode<synchronous>, transform_indices = @transform_3, window_bounds = array<i64: 128, 64>}, {pipeline_mode = #tpu.pipeline_mode<synchronous>, transform_indices = @transform_4, window_bounds = array<i64: 1, 64>}, {pipeline_mode = #tpu.pipeline_mode<synchronous>, transform_indices = @transform_5, window_bounds = array<i64: 64, 32>}, {pipeline_mode = #tpu.pipeline_mode<synchronous>, transform_indices = @transform_6, window_bounds = array<i64: 1, 32>}, {pipeline_mode = #tpu.pipeline_mode<synchronous>, transform_indices = @transform_7, window_bounds = array<i64: 32, 24>}, {pipeline_mode = #tpu.pipeline_mode<synchronous>, transform_indices = @transform_8, window_bounds = array<i64: 1, 24>}, {transform_indices = @transform_9, window_bounds = array<i64: 8, 24>}]} {
    %c0 = arith.constant 0 : index
    %c0_0 = arith.constant 0 : index
    %0 = vector.load %arg1[%c0, %c0_0] : memref<8x240xf32, #tpu.memory_space<vmem>>, vector<8x240xf32>
    %c0_1 = arith.constant 0 : index
    %c0_2 = arith.constant 0 : index
    %1 = vector.load %arg2[%c0_1, %c0_2] : memref<240x128xf32, #tpu.memory_space<vmem>>, vector<240x128xf32>
    %cst = arith.constant dense<0.000000e+00> : vector<8x128xf32>
    %2 = tpu.matmul %0, %1, %cst {dimension_numbers = #tpu.dot_dimension_numbers<[1], [0], [0], [1], [0, 0, 1, 1], [], []>} : vector<8x240xf32>, vector<240x128xf32>, vector<8x128xf32> -> vector<8x128xf32>
    %c0_3 = arith.constant 0 : index
    %c0_4 = arith.constant 0 : index
    %3 = vector.load %arg3[%c0_3, %c0_4] : memref<1x128xf32, #tpu.memory_space<vmem>>, vector<1x128xf32>
    %4 = vector.broadcast %3 : vector<1x128xf32> to vector<8x128xf32>
    %5 = arith.addf %2, %4 : vector<8x128xf32>
    %cst_5 = arith.constant 0.000000e+00 : f32
    %6 = vector.broadcast %cst_5 : f32 to vector<8x128xf32>
    %7 = arith.maximumf %5, %6 : vector<8x128xf32>
    %c0_6 = arith.constant 0 : index
    %c0_7 = arith.constant 0 : index
    %8 = vector.load %arg4[%c0_6, %c0_7] : memref<128x64xf32, #tpu.memory_space<vmem>>, vector<128x64xf32>
    %cst_8 = arith.constant dense<0.000000e+00> : vector<8x64xf32>
    %9 = tpu.matmul %7, %8, %cst_8 {dimension_numbers = #tpu.dot_dimension_numbers<[1], [0], [0], [1], [0, 0, 1, 1], [], []>} : vector<8x128xf32>, vector<128x64xf32>, vector<8x64xf32> -> vector<8x64xf32>
    %c0_9 = arith.constant 0 : index
    %c0_10 = arith.constant 0 : index
    %10 = vector.load %arg5[%c0_9, %c0_10] : memref<1x64xf32, #tpu.memory_space<vmem>>, vector<1x64xf32>
    %11 = vector.broadcast %10 : vector<1x64xf32> to vector<8x64xf32>
    %12 = arith.addf %9, %11 : vector<8x64xf32>
    %cst_11 = arith.constant 0.000000e+00 : f32
    %13 = vector.broadcast %cst_11 : f32 to vector<8x64xf32>
    %14 = arith.maximumf %12, %13 : vector<8x64xf32>
    %c0_12 = arith.constant 0 : index
    %c0_13 = arith.constant 0 : index
    %15 = vector.load %arg6[%c0_12, %c0_13] : memref<64x32xf32, #tpu.memory_space<vmem>>, vector<64x32xf32>
    %cst_14 = arith.constant dense<0.000000e+00> : vector<8x32xf32>
    %16 = tpu.matmul %14, %15, %cst_14 {dimension_numbers = #tpu.dot_dimension_numbers<[1], [0], [0], [1], [0, 0, 1, 1], [], []>} : vector<8x64xf32>, vector<64x32xf32>, vector<8x32xf32> -> vector<8x32xf32>
    %c0_15 = arith.constant 0 : index
    %c0_16 = arith.constant 0 : index
    %17 = vector.load %arg7[%c0_15, %c0_16] : memref<1x32xf32, #tpu.memory_space<vmem>>, vector<1x32xf32>
    %18 = vector.broadcast %17 : vector<1x32xf32> to vector<8x32xf32>
    %19 = arith.addf %16, %18 : vector<8x32xf32>
    %cst_17 = arith.constant 0.000000e+00 : f32
    %20 = vector.broadcast %cst_17 : f32 to vector<8x32xf32>
    %21 = arith.maximumf %19, %20 : vector<8x32xf32>
    %c0_18 = arith.constant 0 : index
    %c0_19 = arith.constant 0 : index
    %22 = vector.load %arg8[%c0_18, %c0_19] : memref<32x24xf32, #tpu.memory_space<vmem>>, vector<32x24xf32>
    %cst_20 = arith.constant dense<0.000000e+00> : vector<8x24xf32>
    %23 = tpu.matmul %21, %22, %cst_20 {dimension_numbers = #tpu.dot_dimension_numbers<[1], [0], [0], [1], [0, 0, 1, 1], [], []>} : vector<8x32xf32>, vector<32x24xf32>, vector<8x24xf32> -> vector<8x24xf32>
    %c0_21 = arith.constant 0 : index
    %c0_22 = arith.constant 0 : index
    %24 = vector.load %arg9[%c0_21, %c0_22] : memref<1x24xf32, #tpu.memory_space<vmem>>, vector<1x24xf32>
    %25 = vector.broadcast %24 : vector<1x24xf32> to vector<8x24xf32>
    %26 = arith.addf %23, %25 : vector<8x24xf32>
    %c0_23 = arith.constant 0 : index
    %c0_24 = arith.constant 0 : index
    %27 = vector.load %arg10[%c0_23, %c0_24] : memref<8x24xf32, #tpu.memory_space<vmem>>, vector<8x24xf32>
    tpu.vector_store %arg10[%c0_23, %c0_24], %26 {strides = array<i32>} : memref<8x24xf32, #tpu.memory_space<vmem>>, vector<8x24xf32>,
    return
  }
  func.func @transform_0(%arg0: i32) -> (i32, i32) {
    %c0_i32 = arith.constant 0 : i32
    %c0_i32_0 = arith.constant 0 : i32
    return %arg0, %c0_i32 : i32, i32
  }
  func.func @transform_1(%arg0: i32) -> (i32, i32) {
    %c0_i32 = arith.constant 0 : i32
    %c0_i32_0 = arith.constant 0 : i32
    %c0_i32_1 = arith.constant 0 : i32
    return %c0_i32, %c0_i32_0 : i32, i32
  }
  func.func @transform_2(%arg0: i32) -> (i32, i32) {
    %c0_i32 = arith.constant 0 : i32
    %c0_i32_0 = arith.constant 0 : i32
    %c0_i32_1 = arith.constant 0 : i32
    return %c0_i32, %c0_i32_0 : i32, i32
  }
  func.func @transform_3(%arg0: i32) -> (i32, i32) {
    %c0_i32 = arith.constant 0 : i32
    %c0_i32_0 = arith.constant 0 : i32
    %c0_i32_1 = arith.constant 0 : i32
    return %c0_i32, %c0_i32_0 : i32, i32
  }
  func.func @transform_4(%arg0: i32) -> (i32, i32) {
    %c0_i32 = arith.constant 0 : i32
    %c0_i32_0 = arith.constant 0 : i32
    %c0_i32_1 = arith.constant 0 : i32
    return %c0_i32, %c0_i32_0 : i32, i32
  }
  func.func @transform_5(%arg0: i32) -> (i32, i32) {
    %c0_i32 = arith.constant 0 : i32
    %c0_i32_0 = arith.constant 0 : i32
    %c0_i32_1 = arith.constant 0 : i32
    return %c0_i32, %c0_i32_0 : i32, i32
  }
  func.func @transform_6(%arg0: i32) -> (i32, i32) {
    %c0_i32 = arith.constant 0 : i32
    %c0_i32_0 = arith.constant 0 : i32
    %c0_i32_1 = arith.constant 0 : i32
    return %c0_i32, %c0_i32_0 : i32, i32
  }
  func.func @transform_7(%arg0: i32) -> (i32, i32) {
    %c0_i32 = arith.constant 0 : i32
    %c0_i32_0 = arith.constant 0 : i32
    %c0_i32_1 = arith.constant 0 : i32
    return %c0_i32, %c0_i32_0 : i32, i32
  }
  func.func @transform_8(%arg0: i32) -> (i32, i32) {
    %c0_i32 = arith.constant 0 : i32
    %c0_i32_0 = arith.constant 0 : i32
    %c0_i32_1 = arith.constant 0 : i32
    return %c0_i32, %c0_i32_0 : i32, i32
  }
  func.func @transform_9(%arg0: i32) -> (i32, i32) {
    %c0_i32 = arith.constant 0 : i32
    %c0_i32_0 = arith.constant 0 : i32
    return %arg0, %c0_i32 : i32, i32
  }
}

</mosaic_0001>

<llo_original>
// kernel: tpu_custom_call.1
$region0: #{tpu_custom_call.1}
  #allocation0 [shape = 'u32[]', space=smem, size = 0x4, offset = 0x4, fixed_abs, tag = 'smem constant byte address 0x4 - core index']
  #allocation1 [shape = 'u32[144,128]{1,0:T(1,128)}', space=vmem, size = 0x12000, scoped, tag = 'internal scratch']
  %s0 = inlined_call_operand.hbm [shape: f32[8,240], index: 0, kind: input, shape index: {}]
  %s1 = inlined_call_operand.vmem [shape: f32[240,128], index: 1, kind: input, shape index: {}]
  %s2 = inlined_call_operand.vmem [shape: f32[1,128], index: 2, kind: input, shape index: {}]
  %s3 = inlined_call_operand.vmem [shape: f32[128,64], index: 3, kind: input, shape index: {}]
  %s4 = inlined_call_operand.vmem [shape: f32[1,64], index: 4, kind: input, shape index: {}]
  %s5 = inlined_call_operand.vmem [shape: f32[64,32], index: 5, kind: input, shape index: {}]
  %s6 = inlined_call_operand.vmem [shape: f32[1,32], index: 6, kind: input, shape index: {}]
  %s7 = inlined_call_operand.vmem [shape: f32[32,24], index: 7, kind: input, shape index: {}]
  %s8 = inlined_call_operand.vmem [shape: f32[1,24], index: 8, kind: input, shape index: {}]
  %s9 = inlined_call_operand.hbm [shape: f32[8,24], index: 9, kind: output, shape index: {}]
  %s10 = sld [smem:[#allocation0]]
  $region50: #{tpu_custom_call.1} parent=0
    _
  %s12 = ssub.s32 1, %s10
  %s13 = scalar_select 0, %s12, %s10
  $region1: #{tpu_custom_call.1} parent=0
    #allocation2 [shape = 'u8[8192]{0}', space=vmem, size = 0x2000, scoped, tag = 'input window, operand 0, single buffered']
    #allocation3 [shape = 's32[1]{0}', space=sflag, size = 0x4, scoped, tag = 'scoped memory for tpu_custom_call.1']
    #allocation4 [shape = 's32[1]{0}', space=sflag, size = 0x4, scoped, tag = 'scoped memory for tpu_custom_call.1']
    #allocation5 [shape = 'u8[4096]{0}', space=vmem, size = 0x1000, scoped, tag = 'output window, operand 0, single buffered']
    %14 = vsyncpa [#allocation3], 0
    %15 = vsyncpa [#allocation4], 0
    // Predicated region
    $region2: #{tpu_custom_call.1} parent=1 // pred_check
      _
    $region3: #{tpu_custom_call.1} parent=1 // pred_check_branch
      %17 = sbr.rel (0) target = $region5
    $region4: #{tpu_custom_call.1} parent=1 // pred_region
      %s19 = ssub.s32 256, 256
      %20 = vsyncadd [#allocation3], %s19
      %s22 = sshll.u32 [#allocation2], 4
      %s23 = int_to_ptr.vmem [resolvable:$true] %s22
      %25 = dma.hbm_to_vmem [thread:$0]  %s0, 256, %s23, [#allocation3]
    $region5: #{tpu_custom_call.1} parent=1 // pred_fallthru
      _
    // Predicated region
    $region6: #{tpu_custom_call.1} parent=1 // pred_check
      _
    $region7: #{tpu_custom_call.1} parent=1 // pred_check_branch
      %27 = sbr.rel (0) target = $region9
    $region8: #{tpu_custom_call.1} parent=1 // pred_region
      _
    $region9: #{tpu_custom_call.1} parent=1 // pred_fallthru
      _
    // Predicated region
    $region10: #{tpu_custom_call.1} parent=1 // pred_check
      _
    $region11: #{tpu_custom_call.1} parent=1 // pred_check_branch
      %29 = sbr.rel (0) target = $region13
    $region12: #{tpu_custom_call.1} parent=1 // pred_region
      _
    $region13: #{tpu_custom_call.1} parent=1 // pred_fallthru
      _
    // Predicated region
    $region14: #{tpu_custom_call.1} parent=1 // pred_check
      _
    $region15: #{tpu_custom_call.1} parent=1 // pred_check_branch
      %31 = sbr.rel (0) target = $region17
    $region16: #{tpu_custom_call.1} parent=1 // pred_region
      _
    $region17: #{tpu_custom_call.1} parent=1 // pred_fallthru
      _
    // Predicated region
    $region18: #{tpu_custom_call.1} parent=1 // pred_check
      _
    $region19: #{tpu_custom_call.1} parent=1 // pred_check_branch
      %33 = sbr.rel (0) target = $region21
    $region20: #{tpu_custom_call.1} parent=1 // pred_region
      _
    $region21: #{tpu_custom_call.1} parent=1 // pred_fallthru
      _
    // Predicated region
    $region22: #{tpu_custom_call.1} parent=1 // pred_check
      _
    $region23: #{tpu_custom_call.1} parent=1 // pred_check_branch
      %35 = sbr.rel (0) target = $region25
    $region24: #{tpu_custom_call.1} parent=1 // pred_region
      _
    $region25: #{tpu_custom_call.1} parent=1 // pred_fallthru
      _
    // Predicated region
    $region26: #{tpu_custom_call.1} parent=1 // pred_check
      _
    $region27: #{tpu_custom_call.1} parent=1 // pred_check_branch
      %37 = sbr.rel (0) target = $region29
    $region28: #{tpu_custom_call.1} parent=1 // pred_region
      _
    $region29: #{tpu_custom_call.1} parent=1 // pred_fallthru
      _
    // Predicated region
    $region30: #{tpu_custom_call.1} parent=1 // pred_check
      _
    $region31: #{tpu_custom_call.1} parent=1 // pred_check_branch
      %39 = sbr.rel (0) target = $region33
    $region32: #{tpu_custom_call.1} parent=1 // pred_region
      _
    $region33: #{tpu_custom_call.1} parent=1 // pred_fallthru
      _
    // Predicated region
    $region34: #{tpu_custom_call.1} parent=1 // pred_check
      _
    $region35: #{tpu_custom_call.1} parent=1 // pred_check_branch
      %41 = sbr.rel (0) target = $region37
    $region36: #{tpu_custom_call.1} parent=1 // pred_region
      _
    $region37: #{tpu_custom_call.1} parent=1 // pred_fallthru
      _
    // Predicated region
    $region38: #{tpu_custom_call.1} parent=1 // pred_check
      _
    $region39: #{tpu_custom_call.1} parent=1 // pred_check_branch
      %43 = sbr.rel (0) target = $region41
    $region40: #{tpu_custom_call.1} parent=1 // pred_region
      %44 = dma.done [#allocation3], 256
    $region41: #{tpu_custom_call.1} parent=1 // pred_fallthru
      _
    %v45 = vld [vmem:[#allocation2] sm:$0xff]
    %v46 = vld [vmem:[#allocation2 + $0x8] sm:$0xff]
    %v47 = vld [vmem:[%s1] sm:$0xff]
    %v48 = vld [vmem:[%s1 + $0x8] sm:$0xff]
    %v49 = vld [vmem:[%s1 + $0x10] sm:$0xff]
    %v50 = vld [vmem:[%s1 + $0x18] sm:$0xff]
    %v51 = vld [vmem:[%s1 + $0x20] sm:$0xff]
    %v52 = vld [vmem:[%s1 + $0x28] sm:$0xff]
    %v53 = vld [vmem:[%s1 + $0x30] sm:$0xff]
    %v54 = vld [vmem:[%s1 + $0x38] sm:$0xff]
    %v55 = vld [vmem:[%s1 + $0x40] sm:$0xff]
    %v56 = vld [vmem:[%s1 + $0x48] sm:$0xff]
    %v57 = vld [vmem:[%s1 + $0x50] sm:$0xff]
    %v58 = vld [vmem:[%s1 + $0x58] sm:$0xff]
    %v59 = vld [vmem:[%s1 + $0x60] sm:$0xff]
    %v60 = vld [vmem:[%s1 + $0x68] sm:$0xff]
    %v61 = vld [vmem:[%s1 + $0x70] sm:$0xff]
    %v62 = vld [vmem:[%s1 + $0x78] sm:$0xff]
    %v63 = vld [vmem:[%s1 + $0x80] sm:$0xff]
    %v64 = vld [vmem:[%s1 + $0x88] sm:$0xff]
    %v65 = vld [vmem:[%s1 + $0x90] sm:$0xff]
    %v66 = vld [vmem:[%s1 + $0x98] sm:$0xff]
    %v67 = vld [vmem:[%s1 + $0xa0] sm:$0xff]
    %v68 = vld [vmem:[%s1 + $0xa8] sm:$0xff]
    %v69 = vld [vmem:[%s1 + $0xb0] sm:$0xff]
    %v70 = vld [vmem:[%s1 + $0xb8] sm:$0xff]
    %v71 = vld [vmem:[%s1 + $0xc0] sm:$0xff]
    %v72 = vld [vmem:[%s1 + $0xc8] sm:$0xff]
    %v73 = vld [vmem:[%s1 + $0xd0] sm:$0xff]
    %v74 = vld [vmem:[%s1 + $0xd8] sm:$0xff]
    %v75 = vld [vmem:[%s1 + $0xe0] sm:$0xff]
    %v76 = vld [vmem:[%s1 + $0xe8] sm:$0xff]
    %v77 = vld [vmem:[%s2] sm:$0x1]
    %v79 = vlaneseq
    %v80 = vshrl.u32 %v79, 7
    %v81 = vsub.s32 0, %v80
    %v82 = vrot.slane %v77, %v81
    %vm84 = vcmask 916480
    %v86 = vsel %vm84, %v46, 0
    %88 = vmatprep.subr.mxu0 0.0
    %89 = vmatpush1.msra.mxu0 %v62
    %90 = vmatprep.subr.mxu0 0.0
    %91 = vmatpush1.msra.mxu0 %v61
    %92 = vmatprep.subr.mxu0 0.0
    %93 = vmatpush1.msra.mxu0 %v60
    %94 = vmatprep.subr.mxu0 0.0
    %95 = vmatpush1.msra.mxu0 %v59
    %96 = vmatprep.subr.mxu0 0.0
    %97 = vmatpush1.msra.mxu0 %v58
    %98 = vmatprep.subr.mxu0 0.0
    %99 = vmatpush1.msra.mxu0 %v57
    %100 = vmatprep.subr.mxu0 0.0
    %101 = vmatpush1.msra.mxu0 %v56
    %102 = vmatprep.subr.mxu0 0.0
    %103 = vmatpush1.msra.mxu0 %v55
    %104 = vmatprep.subr.mxu0 0.0
    %105 = vmatpush1.msra.mxu0 %v54
    %106 = vmatprep.subr.mxu0 0.0
    %107 = vmatpush1.msra.mxu0 %v53
    %108 = vmatprep.subr.mxu0 0.0
    %109 = vmatpush1.msra.mxu0 %v52
    %110 = vmatprep.subr.mxu0 0.0
    %111 = vmatpush1.msra.mxu0 %v51
    %112 = vmatprep.subr.mxu0 0.0
    %113 = vmatpush1.msra.mxu0 %v50
    %114 = vmatprep.subr.mxu0 0.0
    %115 = vmatpush1.msra.mxu0 %v49
    %116 = vmatprep.subr.mxu0 0.0
    %117 = vmatpush1.msra.mxu0 %v48
    %118 = vmatprep.subr.mxu0 0.0
    %119 = vmatpush1.msra.mxu0 %v47
    %120 = vmatprep.subr.mxu0 0.0
    %121 = vmatpush2.msra.mxu0 0.0
    %122 = vmatprep.subr.mxu0 0.0
    %123 = vmatpush2.msra.mxu0 0.0
    %124 = vmatprep.subr.mxu0 0.0
    %125 = vmatpush2.msra.mxu0 %v76
    %126 = vmatprep.subr.mxu0 0.0
    %127 = vmatpush2.msra.mxu0 %v75
    %128 = vmatprep.subr.mxu0 0.0
    %129 = vmatpush2.msra.mxu0 %v74
    %130 = vmatprep.subr.mxu0 0.0
    %131 = vmatpush2.msra.mxu0 %v73
    %132 = vmatprep.subr.mxu0 0.0
    %133 = vmatpush2.msra.mxu0 %v72
    %134 = vmatprep.subr.mxu0 0.0
    %135 = vmatpush2.msra.mxu0 %v71
    %136 = vmatprep.subr.mxu0 0.0
    %137 = vmatpush2.msra.mxu0 %v70
    %138 = vmatprep.subr.mxu0 0.0
    %139 = vmatpush2.msra.mxu0 %v69
    %140 = vmatprep.subr.mxu0 0.0
    %141 = vmatpush2.msra.mxu0 %v68
    %142 = vmatprep.subr.mxu0 0.0
    %143 = vmatpush2.msra.mxu0 %v67
    %144 = vmatprep.subr.mxu0 0.0
    %145 = vmatpush2.msra.mxu0 %v66
    %146 = vmatprep.subr.mxu0 0.0
    %147 = vmatpush2.msra.mxu0 %v65
    %148 = vmatprep.subr.mxu0 0.0
    %149 = vmatpush2.msra.mxu0 %v64
    %150 = vmatprep.subr.mxu0 0.0
    %151 = vmatpush2.msra.mxu0 %v63
    %152 = vmatprep.mubr.f32.mxu0 %v86
    %153 = vmatmul.mubr.f32.gmra.mxu0 %v45
    %v154 = vpop.f32.mrf.mxu0
    %v155 = vadd.f32 %v82, %v154
    %v156 = vpop.f32.mrf.mxu0
    %157 = vdwg.mxu0
    %v158 = vmax.f32 %v155, 0.0
    %v159 = vld [vmem:[%s3] sm:$0xff]
    %v160 = vld [vmem:[%s3 + $0x8] sm:$0xff]
    %v161 = vld [vmem:[%s3 + $0x10] sm:$0xff]
    %v162 = vld [vmem:[%s3 + $0x18] sm:$0xff]
    %v163 = vld [vmem:[%s3 + $0x20] sm:$0xff]
    %v164 = vld [vmem:[%s3 + $0x28] sm:$0xff]
    %v165 = vld [vmem:[%s3 + $0x30] sm:$0xff]
    %v166 = vld [vmem:[%s3 + $0x38] sm:$0xff]
    %v167 = vld [vmem:[%s3 + $0x40] sm:$0xff]
    %v168 = vld [vmem:[%s3 + $0x48] sm:$0xff]
    %v169 = vld [vmem:[%s3 + $0x50] sm:$0xff]
    %v170 = vld [vmem:[%s3 + $0x58] sm:$0xff]
    %v171 = vld [vmem:[%s3 + $0x60] sm:$0xff]
    %v172 = vld [vmem:[%s3 + $0x68] sm:$0xff]
    %v173 = vld [vmem:[%s3 + $0x70] sm:$0xff]
    %v174 = vld [vmem:[%s3 + $0x78] sm:$0xff]
    %v175 = vld [vmem:[%s4] sm:$0x1]
    %v177 = vlaneseq
    %v178 = vshrl.u32 %v177, 7
    %v179 = vsub.s32 0, %v178
    %v180 = vrot.slane %v175, %v179
    %182 = vmatprep.subr.mxu0 0.0
    %183 = vmatpush1.msra.mxu0 %v174
    %184 = vmatprep.subr.mxu0 0.0
    %185 = vmatpush1.msra.mxu0 %v173
    %186 = vmatprep.subr.mxu0 0.0
    %187 = vmatpush1.msra.mxu0 %v172
    %188 = vmatprep.subr.mxu0 0.0
    %189 = vmatpush1.msra.mxu0 %v171
    %190 = vmatprep.subr.mxu0 0.0
    %191 = vmatpush1.msra.mxu0 %v170
    %192 = vmatprep.subr.mxu0 0.0
    %193 = vmatpush1.msra.mxu0 %v169
    %194 = vmatprep.subr.mxu0 0.0
    %195 = vmatpush1.msra.mxu0 %v168
    %196 = vmatprep.subr.mxu0 0.0
    %197 = vmatpush1.msra.mxu0 %v167
    %198 = vmatprep.subr.mxu0 0.0
    %199 = vmatpush1.msra.mxu0 %v166
    %200 = vmatprep.subr.mxu0 0.0
    %201 = vmatpush1.msra.mxu0 %v165
    %202 = vmatprep.subr.mxu0 0.0
    %203 = vmatpush1.msra.mxu0 %v164
    %204 = vmatprep.subr.mxu0 0.0
    %205 = vmatpush1.msra.mxu0 %v163
    %206 = vmatprep.subr.mxu0 0.0
    %207 = vmatpush1.msra.mxu0 %v162
    %208 = vmatprep.subr.mxu0 0.0
    %209 = vmatpush1.msra.mxu0 %v161
    %210 = vmatprep.subr.mxu0 0.0
    %211 = vmatpush1.msra.mxu0 %v160
    %212 = vmatprep.subr.mxu0 0.0
    %213 = vmatpush1.msra.mxu0 %v159
    %214 = vmatprep.subr.mxu0 0.0
    %215 = vmatpush2.msra.mxu0 0.0
    %216 = vmatprep.subr.mxu0 0.0
    %217 = vmatpush2.msra.mxu0 0.0
    %218 = vmatprep.subr.mxu0 0.0
    %219 = vmatpush2.msra.mxu0 0.0
    %220 = vmatprep.subr.mxu0 0.0
    %221 = vmatpush2.msra.mxu0 0.0
    %222 = vmatprep.subr.mxu0 0.0
    %223 = vmatpush2.msra.mxu0 0.0
    %224 = vmatprep.subr.mxu0 0.0
    %225 = vmatpush2.msra.mxu0 0.0
    %226 = vmatprep.subr.mxu0 0.0
    %227 = vmatpush2.msra.mxu0 0.0
    %228 = vmatprep.subr.mxu0 0.0
    %229 = vmatpush2.msra.mxu0 0.0
    %230 = vmatprep.subr.mxu0 0.0
    %231 = vmatpush2.msra.mxu0 0.0
    %232 = vmatprep.subr.mxu0 0.0
    %233 = vmatpush2.msra.mxu0 0.0
    %234 = vmatprep.subr.mxu0 0.0
    %235 = vmatpush2.msra.mxu0 0.0
    %236 = vmatprep.subr.mxu0 0.0
    %237 = vmatpush2.msra.mxu0 0.0
    %238 = vmatprep.subr.mxu0 0.0
    %239 = vmatpush2.msra.mxu0 0.0
    %240 = vmatprep.subr.mxu0 0.0
    %241 = vmatpush2.msra.mxu0 0.0
    %242 = vmatprep.subr.mxu0 0.0
    %243 = vmatpush2.msra.mxu0 0.0
    %244 = vmatprep.subr.mxu0 0.0
    %245 = vmatpush2.msra.mxu0 0.0
    %246 = vmatprep.mubr.f32.mxu0 0.0
    %247 = vmatmul.mubr.f32.gmra.mxu0 %v158
    %v248 = vpop.f32.mrf.mxu0
    %v249 = vadd.f32 %v180, %v248
    %v250 = vpop.f32.mrf.mxu0
    %251 = vdwg.mxu0
    %v252 = vmax.f32 %v249, 0.0
    %v253 = vld [vmem:[%s5] sm:$0xff]
    %v254 = vld [vmem:[%s5 + $0x8] sm:$0xff]
    %v255 = vld [vmem:[%s5 + $0x10] sm:$0xff]
    %v256 = vld [vmem:[%s5 + $0x18] sm:$0xff]
    %v257 = vld [vmem:[%s5 + $0x20] sm:$0xff]
    %v258 = vld [vmem:[%s5 + $0x28] sm:$0xff]
    %v259 = vld [vmem:[%s5 + $0x30] sm:$0xff]
    %v260 = vld [vmem:[%s5 + $0x38] sm:$0xff]
    %v261 = vld [vmem:[%s6] sm:$0x1]
    %v263 = vlaneseq
    %v264 = vshrl.u32 %v263, 7
    %v265 = vsub.s32 0, %v264
    %v266 = vrot.slane %v261, %v265
    %vm268 = vcmask 523264
    %v270 = vsel %vm268, %v252, 0
    %272 = vmatprep.subr.mxu0 0.0
    %273 = vmatpush1.msra.mxu0 0.0
    %274 = vmatprep.subr.mxu0 0.0
    %275 = vmatpush1.msra.mxu0 0.0
    %276 = vmatprep.subr.mxu0 0.0
    %277 = vmatpush1.msra.mxu0 0.0
    %278 = vmatprep.subr.mxu0 0.0
    %279 = vmatpush1.msra.mxu0 0.0
    %280 = vmatprep.subr.mxu0 0.0
    %281 = vmatpush1.msra.mxu0 0.0
    %282 = vmatprep.subr.mxu0 0.0
    %283 = vmatpush1.msra.mxu0 0.0
    %284 = vmatprep.subr.mxu0 0.0
    %285 = vmatpush1.msra.mxu0 0.0
    %286 = vmatprep.subr.mxu0 0.0
    %287 = vmatpush1.msra.mxu0 0.0
    %288 = vmatprep.subr.mxu0 0.0
    %289 = vmatpush1.msra.mxu0 %v260
    %290 = vmatprep.subr.mxu0 0.0
    %291 = vmatpush1.msra.mxu0 %v259
    %292 = vmatprep.subr.mxu0 0.0
    %293 = vmatpush1.msra.mxu0 %v258
    %294 = vmatprep.subr.mxu0 0.0
    %295 = vmatpush1.msra.mxu0 %v257
    %296 = vmatprep.subr.mxu0 0.0
    %297 = vmatpush1.msra.mxu0 %v256
    %298 = vmatprep.subr.mxu0 0.0
    %299 = vmatpush1.msra.mxu0 %v255
    %300 = vmatprep.subr.mxu0 0.0
    %301 = vmatpush1.msra.mxu0 %v254
    %302 = vmatprep.subr.mxu0 0.0
    %303 = vmatpush1.msra.mxu0 %v253
    %304 = vmatprep.subr.mxu0 0.0
    %305 = vmatpush2.msra.mxu0 0.0
    %306 = vmatprep.subr.mxu0 0.0
    %307 = vmatpush2.msra.mxu0 0.0
    %308 = vmatprep.subr.mxu0 0.0
    %309 = vmatpush2.msra.mxu0 0.0
    %310 = vmatprep.subr.mxu0 0.0
    %311 = vmatpush2.msra.mxu0 0.0
    %312 = vmatprep.subr.mxu0 0.0
    %313 = vmatpush2.msra.mxu0 0.0
    %314 = vmatprep.subr.mxu0 0.0
    %315 = vmatpush2.msra.mxu0 0.0
    %316 = vmatprep.subr.mxu0 0.0
    %317 = vmatpush2.msra.mxu0 0.0
    %318 = vmatprep.subr.mxu0 0.0
    %319 = vmatpush2.msra.mxu0 0.0
    %320 = vmatprep.subr.mxu0 0.0
    %321 = vmatpush2.msra.mxu0 0.0
    %322 = vmatprep.subr.mxu0 0.0
    %323 = vmatpush2.msra.mxu0 0.0
    %324 = vmatprep.subr.mxu0 0.0
    %325 = vmatpush2.msra.mxu0 0.0
    %326 = vmatprep.subr.mxu0 0.0
    %327 = vmatpush2.msra.mxu0 0.0
    %328 = vmatprep.subr.mxu0 0.0
    %329 = vmatpush2.msra.mxu0 0.0
    %330 = vmatprep.subr.mxu0 0.0
    %331 = vmatpush2.msra.mxu0 0.0
    %332 = vmatprep.subr.mxu0 0.0
    %333 = vmatpush2.msra.mxu0 0.0
    %334 = vmatprep.subr.mxu0 0.0
    %335 = vmatpush2.msra.mxu0 0.0
    %336 = vmatprep.mubr.f32.mxu0 0.0
    %337 = vmatmul.mubr.f32.gmra.mxu0 %v270
    %v338 = vpop.f32.mrf.mxu0
    %v339 = vadd.f32 %v266, %v338
    %v340 = vpop.f32.mrf.mxu0
    %341 = vdwg.mxu0
    %v342 = vmax.f32 %v339, 0.0
    %v343 = vld [vmem:[%s7] sm:$0xff]
    %v344 = vld [vmem:[%s7 + $0x8] sm:$0xff]
    %v345 = vld [vmem:[%s7 + $0x10] sm:$0xff]
    %v346 = vld [vmem:[%s7 + $0x18] sm:$0xff]
    %v347 = vld [vmem:[%s8] sm:$0x1]
    %v349 = vlaneseq
    %v350 = vshrl.u32 %v349, 7
    %v351 = vsub.s32 0, %v350
    %v352 = vrot.slane %v347, %v351
    %vm354 = vcmask 261120
    %v356 = vsel %vm354, %v342, 0
    %358 = vmatprep.subr.mxu0 0.0
    %359 = vmatpush1.msra.mxu0 0.0
    %360 = vmatprep.subr.mxu0 0.0
    %361 = vmatpush1.msra.mxu0 0.0
    %362 = vmatprep.subr.mxu0 0.0
    %363 = vmatpush1.msra.mxu0 0.0
    %364 = vmatprep.subr.mxu0 0.0
    %365 = vmatpush1.msra.mxu0 0.0
    %366 = vmatprep.subr.mxu0 0.0
    %367 = vmatpush1.msra.mxu0 0.0
    %368 = vmatprep.subr.mxu0 0.0
    %369 = vmatpush1.msra.mxu0 0.0
    %370 = vmatprep.subr.mxu0 0.0
    %371 = vmatpush1.msra.mxu0 0.0
    %372 = vmatprep.subr.mxu0 0.0
    %373 = vmatpush1.msra.mxu0 0.0
    %374 = vmatprep.subr.mxu0 0.0
    %375 = vmatpush1.msra.mxu0 0.0
    %376 = vmatprep.subr.mxu0 0.0
    %377 = vmatpush1.msra.mxu0 0.0
    %378 = vmatprep.subr.mxu0 0.0
    %379 = vmatpush1.msra.mxu0 0.0
    %380 = vmatprep.subr.mxu0 0.0
    %381 = vmatpush1.msra.mxu0 0.0
    %382 = vmatprep.subr.mxu0 0.0
    %383 = vmatpush1.msra.mxu0 %v346
    %384 = vmatprep.subr.mxu0 0.0
    %385 = vmatpush1.msra.mxu0 %v345
    %386 = vmatprep.subr.mxu0 0.0
    %387 = vmatpush1.msra.mxu0 %v344
    %388 = vmatprep.subr.mxu0 0.0
    %389 = vmatpush1.msra.mxu0 %v343
    %390 = vmatprep.subr.mxu0 0.0
    %391 = vmatpush2.msra.mxu0 0.0
    %392 = vmatprep.subr.mxu0 0.0
    %393 = vmatpush2.msra.mxu0 0.0
    %394 = vmatprep.subr.mxu0 0.0
    %395 = vmatpush2.msra.mxu0 0.0
    %396 = vmatprep.subr.mxu0 0.0
    %397 = vmatpush2.msra.mxu0 0.0
    %398 = vmatprep.subr.mxu0 0.0
    %399 = vmatpush2.msra.mxu0 0.0
    %400 = vmatprep.subr.mxu0 0.0
    %401 = vmatpush2.msra.mxu0 0.0
    %402 = vmatprep.subr.mxu0 0.0
    %403 = vmatpush2.msra.mxu0 0.0
    %404 = vmatprep.subr.mxu0 0.0
    %405 = vmatpush2.msra.mxu0 0.0
    %406 = vmatprep.subr.mxu0 0.0
    %407 = vmatpush2.msra.mxu0 0.0
    %408 = vmatprep.subr.mxu0 0.0
    %409 = vmatpush2.msra.mxu0 0.0
    %410 = vmatprep.subr.mxu0 0.0
    %411 = vmatpush2.msra.mxu0 0.0
    %412 = vmatprep.subr.mxu0 0.0
    %413 = vmatpush2.msra.mxu0 0.0
    %414 = vmatprep.subr.mxu0 0.0
    %415 = vmatpush2.msra.mxu0 0.0
    %416 = vmatprep.subr.mxu0 0.0
    %417 = vmatpush2.msra.mxu0 0.0
    %418 = vmatprep.subr.mxu0 0.0
    %419 = vmatpush2.msra.mxu0 0.0
    %420 = vmatprep.subr.mxu0 0.0
    %421 = vmatpush2.msra.mxu0 0.0
    %422 = vmatprep.mubr.f32.mxu0 0.0
    %423 = vmatmul.mubr.f32.gmra.mxu0 %v356
    %v424 = vpop.f32.mrf.mxu0
    %v425 = vadd.f32 %v352, %v424
    %v426 = vpop.f32.mrf.mxu0
    %427 = vdwg.mxu0
    %vm428 = vcmask 195584
    %429 = vst.msk [vmem:[#allocation5] sm:$0xff] %vm428, %v425
    // Predicated region
    $region42: #{tpu_custom_call.1} parent=1 // pred_check
      _
    $region43: #{tpu_custom_call.1} parent=1 // pred_check_branch
      %431 = sbr.rel (0) target = $region45
    $region44: #{tpu_custom_call.1} parent=1 // pred_region
      %s433 = ssub.s32 128, 128
      %434 = vsyncadd [#allocation4], %s433
      %s436 = sshll.u32 [#allocation5], 4
      %s437 = int_to_ptr.vmem [resolvable:$true] %s436
      %439 = dma.vmem_to_hbm [thread:$0]  %s437, 128, %s9, [#allocation4]
    $region45: #{tpu_custom_call.1} parent=1 // pred_fallthru
      _
    // Predicated region
    $region46: #{tpu_custom_call.1} parent=1 // pred_check
      _
    $region47: #{tpu_custom_call.1} parent=1 // pred_check_branch
      %441 = sbr.rel (0) target = $region49
    $region48: #{tpu_custom_call.1} parent=1 // pred_region
      %442 = dma.done [#allocation4], 128
    $region49: #{tpu_custom_call.1} parent=1 // pred_fallthru
      _
    %443 = vsyncpa [#allocation3], 1
    %444 = vsyncpa [#allocation4], 1

</llo_original>
